<compile_context>
chip_gen: v6e
topology: v6e:2x2x1
jax: 0.10.0
libtpu: 0.0.40
codegen_flags: <defaults>
</compile_context>

<pallas_src>
import functools

import jax
import jax.numpy as jnp
from jax.experimental import pallas as pl
from jax.experimental.pallas import tpu as pltpu


def _round_up(x: int, m: int) -> int:
    return ((x + m - 1) // m) * m


def _mlp_kernel(x_ref, w1_ref, b1_ref, w2_ref, b2_ref, o_ref):
    # x streams from HBM as f32 once; the bf16 cast rides the VPU for free.
    x = x_ref[...].astype(jnp.bfloat16)
    # fc1: (TB, In) @ (In, Hp) -> f32 accumulate; bias + ReLU in f32.
    h = jnp.dot(x, w1_ref[...], preferred_element_type=jnp.float32)
    h = jnp.maximum(h + b1_ref[...], 0.0)
    # fc2: (TB, Hp) @ (Hp, Cp) -> f32 accumulate (bf16 MXU inputs).
    out = jnp.dot(h.astype(jnp.bfloat16), w2_ref[...],
                  preferred_element_type=jnp.float32)
    out = out + b2_ref[...]
    # Sigmoid: exp and approx reciprocal both ride the EUP slot.
    sig = pl.reciprocal(1.0 + jnp.exp(-out), approx=True)
    # Store only the live class columns (C << Cp): a masked store of C lanes
    # costs far fewer HBM bytes than writing the 128-lane padded f32 slab.
    o_ref[...] = sig[:, :o_ref.shape[1]].astype(o_ref.dtype)


def _resident_spec(shape):
    """BlockSpec for an operand that is constant across the batch grid.

    Single-buffered (pl.Buffered(1)) so resident weights don't pay 2x VMEM;
    falls back to the default pipelining if pipeline_mode is unsupported.
    """
    try:
        return pl.BlockSpec(shape, lambda i: (0, 0), pipeline_mode=pl.Buffered(1))
    except TypeError:
        return pl.BlockSpec(shape, lambda i: (0, 0))


def prepare_params(w1, b1, w2, b2):
    """Pad feature dims to 128 lanes and cast weights to bf16.

    Call ONCE (outside the per-step forward) and reuse the result; this keeps
    the per-call HBM traffic limited to x and the (B, C) output.
    Zero padding keeps the math exact: padded hidden cols get bias 0 ->
    ReLU(0) = 0 -> contribute nothing to fc2; padded class cols are never stored.
    """
    In, H = w1.shape
    C = w2.shape[1]
    Hp = _round_up(H, 128)
    Cp = _round_up(C, 128)
    w1_p = jnp.zeros((In, Hp), jnp.bfloat16).at[:, :H].set(w1.astype(jnp.bfloat16))
    b1_p = jnp.zeros((1, Hp), jnp.float32).at[0, :H].set(b1.astype(jnp.float32))
    w2_p = jnp.zeros((Hp, Cp), jnp.bfloat16).at[:H, :C].set(w2.astype(jnp.bfloat16))
    b2_p = jnp.zeros((1, Cp), jnp.float32).at[0, :C].set(b2.astype(jnp.float32))
    return w1_p, b1_p, w2_p, b2_p, C


@functools.partial(jax.jit, static_argnames=("num_classes", "block_b"))
def neural_net_forward(x, w1_p, b1_p, w2_p, b2_p, *, num_classes, block_b=1024):
    """x: (B, In) f32; padded params from prepare_params(). Returns (B, C) f32."""
    B, In = x.shape
    Hp = w1_p.shape[1]
    Cp = w2_p.shape[1]
    C = num_classes

    # Batch tile: biggest that fits (amortizes ~0.35us/step), 16-row aligned.
    TB = max(16, min(block_b, _round_up(B, 16)))
    # v7x megacore: if the grid would collapse to a single step, split the
    # batch so dimension_semantics=("parallel",) has >=2 steps to shard.
    if B > 16 and pl.cdiv(B, TB) < 2:
        TB = max(16, _round_up(pl.cdiv(B, 2), 16))
    grid = (pl.cdiv(B, TB),)

    # VMEM budget: single-buffered weights/biases + double-buffered x/out tiles
    # + f32 intermediates + slack.  Capped well below v7x's 64 MiB physical.
    weight_bytes = w1_p.size * 2 + w2_p.size * 2 + (Hp + Cp) * 4
    tile_bytes = 2 * (TB * In * 4 + TB * 128 * 4) + TB * Hp * 4 + TB * Cp * 4
    vmem_limit = int(min(max(weight_bytes + tile_bytes + (4 << 20), 32 << 20),
                         48 << 20))

    out = pl.pallas_call(
        _mlp_kernel,
        out_shape=jax.ShapeDtypeStruct((B, C), jnp.float32),
        grid=grid,
        in_specs=[
            pl.BlockSpec((TB, In), lambda i: (i, 0)),   # x tile per grid step
            _resident_spec((In, Hp)),                   # resident weights
            _resident_spec((1, Hp)),
            _resident_spec((Hp, Cp)),
            _resident_spec((1, Cp)),
        ],
        out_specs=pl.BlockSpec((TB, C), lambda i: (i, 0)),
        compiler_params=pltpu.CompilerParams(
            dimension_semantics=("parallel",),  # shard batch tiles across TCs (v7x)
            vmem_limit_bytes=vmem_limit,
        ),
    )(x, w1_p, b1_p, w2_p, b2_p)
    return out

    # TODO(synk): switch to a K/N-tiled accumulator path (grid axis over Hp/In
    # with pl.when init/finalize) once resident bf16 weights
    # 2*(In*Hp + Hp*Cp) bytes exceed ~24-32 MiB — that's the v7x (64 MiB VMEM)
    # ceiling with single-buffered weights plus double-buffered x/out tiles;
    # v5e/v6e (128 MiB) have roughly 3x more headroom before tiling is needed.


def reference_forward(x, w1, b1, w2, b2):
    # Mirrors the kernel's bf16-input / f32-accumulate numerics.
    xb = x.astype(jnp.bfloat16)
    w1b = w1.astype(jnp.bfloat16)
    w2b = w2.astype(jnp.bfloat16)
    h = jnp.maximum(
        jnp.dot(xb, w1b, preferred_element_type=jnp.float32) + b1, 0.0)
    out = jnp.dot(h.astype(jnp.bfloat16), w2b,
                  preferred_element_type=jnp.float32) + b2
    return jax.nn.sigmoid(out)


if __name__ == "__main__":
    # Small demo shapes consistent with the module.
    batch, input_size, hidden_size, num_classes = 8, 32, 32, 4

    key = jax.random.PRNGKey(0)
    kx, k1, kb1, k2, kb2 = jax.random.split(key, 5)

    x = jax.random.normal(kx, (batch, input_size), dtype=jnp.float32)
    # nn.Linear-shaped parameters, stored transposed ((in, out)).
    w1 = jax.random.normal(k1, (input_size, hidden_size), dtype=jnp.float32) * 0.1
    b1 = jax.random.normal(kb1, (hidden_size,), dtype=jnp.float32) * 0.1
    w2 = jax.random.normal(k2, (hidden_size, num_classes), dtype=jnp.float32) * 0.1
    b2 = jax.random.normal(kb2, (num_classes,), dtype=jnp.float32) * 0.1

    # Pad/cast the parameters once; reuse across forward calls.
    w1_p, b1_p, w2_p, b2_p, C = prepare_params(w1, b1, w2, b2)

    out = neural_net_forward(x, w1_p, b1_p, w2_p, b2_p, num_classes=C)
    jax.block_until_ready(out)

    ref = reference_forward(x, w1, b1, w2, b2)
    assert out.shape == (batch, num_classes)
    # Tolerance covers bf16 MXU inputs + approx EUP reciprocal; outputs in [0, 1].
    assert jnp.allclose(out, ref, atol=1e-2, rtol=1e-2), "mismatch vs reference"

    print("KERNEL_OK")
</pallas_src>

<mosaic_0001>
module attributes {stable_mosaic.version = 11 : i64} {
  func.func @_mlp_kernel(%arg0: i32, %arg1: memref<16x32xf32, #tpu.memory_space<vmem>>, %arg2: memref<32x128xbf16, #tpu.memory_space<vmem>>, %arg3: memref<1x128xf32, #tpu.memory_space<vmem>>, %arg4: memref<128x128xbf16, #tpu.memory_space<vmem>>, %arg5: memref<1x128xf32, #tpu.memory_space<vmem>>, %arg6: memref<16x4xf32, #tpu.memory_space<vmem>>) attributes {dimension_semantics = [#tpu.dimension_semantics<parallel>], iteration_bounds = array<i64: 1>, scalar_prefetch = 0 : i64, scratch_operands = 0 : i64, tpu.core_type = #tpu.core_type<tc>, window_params = [{transform_indices = @transform_0, window_bounds = array<i64: 16, 32>}, {pipeline_mode = #tpu.pipeline_mode<synchronous>, transform_indices = @transform_1, window_bounds = array<i64: 32, 128>}, {pipeline_mode = #tpu.pipeline_mode<synchronous>, transform_indices = @transform_2, window_bounds = array<i64: 1, 128>}, {pipeline_mode = #tpu.pipeline_mode<synchronous>, transform_indices = @transform_3, window_bounds = array<i64: 128, 128>}, {pipeline_mode = #tpu.pipeline_mode<synchronous>, transform_indices = @transform_4, window_bounds = array<i64: 1, 128>}, {transform_indices = @transform_5, window_bounds = array<i64: 16, 4>}]} {
    %c0 = arith.constant 0 : index
    %c0_0 = arith.constant 0 : index
    %0 = vector.load %arg1[%c0, %c0_0] : memref<16x32xf32, #tpu.memory_space<vmem>>, vector<16x32xf32>
    %1 = arith.truncf %0 : vector<16x32xf32> to vector<16x32xbf16>
    %c0_1 = arith.constant 0 : index
    %c0_2 = arith.constant 0 : index
    %2 = vector.load %arg2[%c0_1, %c0_2] : memref<32x128xbf16, #tpu.memory_space<vmem>>, vector<32x128xbf16>
    %cst = arith.constant dense<0.000000e+00> : vector<16x128xf32>
    %3 = tpu.matmul %1, %2, %cst {dimension_numbers = #tpu.dot_dimension_numbers<[1], [0], [0], [1], [0, 0, 1, 1], [], []>} : vector<16x32xbf16>, vector<32x128xbf16>, vector<16x128xf32> -> vector<16x128xf32>
    %c0_3 = arith.constant 0 : index
    %c0_4 = arith.constant 0 : index
    %4 = vector.load %arg3[%c0_3, %c0_4] : memref<1x128xf32, #tpu.memory_space<vmem>>, vector<1x128xf32>
    %5 = vector.broadcast %4 : vector<1x128xf32> to vector<16x128xf32>
    %6 = arith.addf %3, %5 : vector<16x128xf32>
    %cst_5 = arith.constant 0.000000e+00 : f32
    %7 = vector.broadcast %cst_5 : f32 to vector<16x128xf32>
    %8 = arith.maximumf %6, %7 : vector<16x128xf32>
    %9 = arith.truncf %8 : vector<16x128xf32> to vector<16x128xbf16>
    %c0_6 = arith.constant 0 : index
    %c0_7 = arith.constant 0 : index
    %10 = vector.load %arg4[%c0_6, %c0_7] : memref<128x128xbf16, #tpu.memory_space<vmem>>, vector<128x128xbf16>
    %cst_8 = arith.constant dense<0.000000e+00> : vector<16x128xf32>
    %11 = tpu.matmul %9, %10, %cst_8 {dimension_numbers = #tpu.dot_dimension_numbers<[1], [0], [0], [1], [0, 0, 1, 1], [], []>} : vector<16x128xbf16>, vector<128x128xbf16>, vector<16x128xf32> -> vector<16x128xf32>
    %c0_9 = arith.constant 0 : index
    %c0_10 = arith.constant 0 : index
    %12 = vector.load %arg5[%c0_9, %c0_10] : memref<1x128xf32, #tpu.memory_space<vmem>>, vector<1x128xf32>
    %13 = vector.broadcast %12 : vector<1x128xf32> to vector<16x128xf32>
    %14 = arith.addf %11, %13 : vector<16x128xf32>
    %cst_11 = arith.constant 0.000000e+00 : f32
    %15 = vector.broadcast %cst_11 : f32 to vector<16x128xf32>
    %16 = arith.subf %15, %14 : vector<16x128xf32>
    %17 = math.exp %16 : vector<16x128xf32>
    %cst_12 = arith.constant 1.000000e+00 : f32
    %18 = vector.broadcast %cst_12 : f32 to vector<16x128xf32>
    %19 = arith.addf %18, %17 : vector<16x128xf32>
    %20 = tpu.reciprocal %19 {approx = true} : vector<16x128xf32> -> vector<16x128xf32>
    %21 = vector.extract_strided_slice %20 {offsets = [0, 0], sizes = [16, 4], strides = [1, 1]} : vector<16x128xf32> to vector<16x4xf32>
    %c0_13 = arith.constant 0 : index
    %c0_14 = arith.constant 0 : index
    %22 = vector.load %arg6[%c0_13, %c0_14] : memref<16x4xf32, #tpu.memory_space<vmem>>, vector<16x4xf32>
    tpu.vector_store %arg6[%c0_13, %c0_14], %21 {strides = array<i32>} : memref<16x4xf32, #tpu.memory_space<vmem>>, vector<16x4xf32>,
    return
  }
  func.func @transform_0(%arg0: i32) -> (i32, i32) {
    %c0_i32 = arith.constant 0 : i32
    %c0_i32_0 = arith.constant 0 : i32
    return %arg0, %c0_i32 : i32, i32
  }
  func.func @transform_1(%arg0: i32) -> (i32, i32) {
    %c0_i32 = arith.constant 0 : i32
    %c0_i32_0 = arith.constant 0 : i32
    %c0_i32_1 = arith.constant 0 : i32
    return %c0_i32, %c0_i32_0 : i32, i32
  }
  func.func @transform_2(%arg0: i32) -> (i32, i32) {
    %c0_i32 = arith.constant 0 : i32
    %c0_i32_0 = arith.constant 0 : i32
    %c0_i32_1 = arith.constant 0 : i32
    return %c0_i32, %c0_i32_0 : i32, i32
  }
  func.func @transform_3(%arg0: i32) -> (i32, i32) {
    %c0_i32 = arith.constant 0 : i32
    %c0_i32_0 = arith.constant 0 : i32
    %c0_i32_1 = arith.constant 0 : i32
    return %c0_i32, %c0_i32_0 : i32, i32
  }
  func.func @transform_4(%arg0: i32) -> (i32, i32) {
    %c0_i32 = arith.constant 0 : i32
    %c0_i32_0 = arith.constant 0 : i32
    %c0_i32_1 = arith.constant 0 : i32
    return %c0_i32, %c0_i32_0 : i32, i32
  }
  func.func @transform_5(%arg0: i32) -> (i32, i32) {
    %c0_i32 = arith.constant 0 : i32
    %c0_i32_0 = arith.constant 0 : i32
    return %arg0, %c0_i32 : i32, i32
  }
}

</mosaic_0001>

<llo_original>
// kernel: neural_net_forward.1
$region0: #{neural_net_forward.1}
  #allocation0 [shape = 'u32[]', space=smem, size = 0x4, offset = 0x4, fixed_abs, tag = 'smem constant byte address 0x4 - core index']
  #allocation1 [shape = 'u32[144,128]{1,0:T(1,128)}', space=vmem, size = 0x12000, scoped, tag = 'internal scratch']
  %s0 = inlined_call_operand.hbm [shape: f32[8,32], index: 0, kind: input, shape index: {}]
  %s1 = inlined_call_operand.hbm [shape: bf16[32,128], index: 1, kind: input, shape index: {}]
  %s2 = inlined_call_operand.vmem [shape: f32[1,128], index: 2, kind: input, shape index: {}]
  %s3 = inlined_call_operand.hbm [shape: bf16[128,128], index: 3, kind: input, shape index: {}]
  %s4 = inlined_call_operand.vmem [shape: f32[1,128], index: 4, kind: input, shape index: {}]
  %s5 = inlined_call_operand.vmem [shape: f32[8,4], index: 5, kind: output, shape index: {}]
  %s6 = sld [smem:[#allocation0]]
  $region76: #{neural_net_forward.1} parent=0
    _
  %s8 = ssub.s32 1, %s6
  %s9 = scalar_select 0, %s8, %s6
  $region1: #{neural_net_forward.1} parent=0
    #allocation2 [shape = 'u8[8192]{0}', space=vmem, size = 0x2000, scoped, tag = 'input window, operand 0, single buffered']
    #allocation3 [shape = 's32[1]{0}', space=sflag, size = 0x4, scoped, tag = 'scoped memory for neural_net_forward.1']
    #allocation4 [shape = 'u8[8192]{0}', space=vmem, size = 0x2000, scoped, tag = 'input window, operand 1, single buffered']
    #allocation5 [shape = 's32[1]{0}', space=sflag, size = 0x4, scoped, tag = 'scoped memory for neural_net_forward.1']
    #allocation6 [shape = 'u8[32768]{0}', space=vmem, size = 0x8000, scoped, tag = 'input window, operand 3, single buffered']
    #allocation7 [shape = 'u8[8192]{0}', space=vmem, size = 0x2000, scoped, tag = 'output window, operand 0, single buffered']
    %10 = vsyncpa [#allocation3], 0
    %11 = vsyncpa [#allocation5], 0
    // Predicated region
    $region2: #{neural_net_forward.1} parent=1 // pred_check
      _
    $region3: #{neural_net_forward.1} parent=1 // pred_check_branch
      %13 = sbr.rel (0) target = $region5
    $region4: #{neural_net_forward.1} parent=1 // pred_region
      %s15 = ssub.s32 256, 128
      %16 = vsyncadd [#allocation3], %s15
      %s17 = sshll.u32 [#allocation2], 4
      %s18 = int_to_ptr.vmem [resolvable:$true] %s17
      %23 = dma.hbm_to_vmem [thread:$0]  %s0, 128, %s18, [#allocation3], 128, 128, 8
    $region5: #{neural_net_forward.1} parent=1 // pred_fallthru
      _
    // Predicated region
    $region6: #{neural_net_forward.1} parent=1 // pred_check
      _
    $region7: #{neural_net_forward.1} parent=1 // pred_check_branch
      %25 = sbr.rel (0) target = $region9
    $region8: #{neural_net_forward.1} parent=1 // pred_region
      %s27 = ssub.s32 256, 256
      %28 = vsyncadd [#allocation5], %s27
      %s29 = sshll.u32 [#allocation4], 4
      %s30 = int_to_ptr.vmem [resolvable:$true] %s29
      %35 = dma.hbm_to_vmem [thread:$0]  %s1, 256, %s30, [#allocation5], 64, 64, 4
    $region9: #{neural_net_forward.1} parent=1 // pred_fallthru
      _
    // Predicated region
    $region10: #{neural_net_forward.1} parent=1 // pred_check
      _
    $region11: #{neural_net_forward.1} parent=1 // pred_check_branch
      %37 = sbr.rel (0) target = $region13
    $region12: #{neural_net_forward.1} parent=1 // pred_region
      _
    $region13: #{neural_net_forward.1} parent=1 // pred_fallthru
      _
    // Predicated region
    $region14: #{neural_net_forward.1} parent=1 // pred_check
      _
    $region15: #{neural_net_forward.1} parent=1 // pred_check_branch
      %39 = sbr.rel (0) target = $region17
    $region16: #{neural_net_forward.1} parent=1 // pred_region
      %s41 = ssub.s32 1024, 1024
      %42 = vsyncadd [#allocation5], %s41
      %s43 = sshll.u32 [#allocation6], 4
      %s44 = int_to_ptr.vmem [resolvable:$true] %s43
      %49 = dma.hbm_to_vmem [thread:$0]  %s3, 1024, %s44, [#allocation5], 64, 64, 4
    $region17: #{neural_net_forward.1} parent=1 // pred_fallthru
      _
    // Predicated region
    $region18: #{neural_net_forward.1} parent=1 // pred_check
      _
    $region19: #{neural_net_forward.1} parent=1 // pred_check_branch
      %51 = sbr.rel (0) target = $region21
    $region20: #{neural_net_forward.1} parent=1 // pred_region
      _
    $region21: #{neural_net_forward.1} parent=1 // pred_fallthru
      _
    // Predicated region
    $region22: #{neural_net_forward.1} parent=1 // pred_check
      _
    $region23: #{neural_net_forward.1} parent=1 // pred_check_branch
      %53 = sbr.rel (0) target = $region25
    $region24: #{neural_net_forward.1} parent=1 // pred_region
      %54 = dma.done [#allocation3], 256
    $region25: #{neural_net_forward.1} parent=1 // pred_fallthru
      _
    // Predicated region
    $region26: #{neural_net_forward.1} parent=1 // pred_check
      _
    $region27: #{neural_net_forward.1} parent=1 // pred_check_branch
      %56 = sbr.rel (0) target = $region29
    $region28: #{neural_net_forward.1} parent=1 // pred_region
      %57 = dma.done [#allocation5], 256
    $region29: #{neural_net_forward.1} parent=1 // pred_fallthru
      _
    // Predicated region
    $region30: #{neural_net_forward.1} parent=1 // pred_check
      _
    $region31: #{neural_net_forward.1} parent=1 // pred_check_branch
      %59 = sbr.rel (0) target = $region33
    $region32: #{neural_net_forward.1} parent=1 // pred_region
      %60 = dma.done [#allocation5], 1024
    $region33: #{neural_net_forward.1} parent=1 // pred_fallthru
      _
    %v62 = vld [vmem:[#allocation2] sm:$0xff]
    %v63 = vld [vmem:[#allocation2 + $0x8] sm:$0xff]
    %v64 = vpack.c.bf16 %v63, %v62
    %v65 = vld [vmem:[#allocation4] sm:$0xf]
    %v66 = vld [vmem:[#allocation4 + $0x4] sm:$0xf]
    %v67 = vld [vmem:[#allocation4 + $0x8] sm:$0xf]
    %v68 = vld [vmem:[#allocation4 + $0xc] sm:$0xf]
    %v69 = vld [vmem:[%s2] sm:$0x1]
    %v71 = vlaneseq
    %v72 = vshrl.u32 %v71, 7
    %v73 = vsub.s32 0, %v72
    %v74 = vrot.slane %v69, %v73
    %v80 = vunpack.c.l.b16 %v65
    %v81 = vunpack.c.l.b16 %v66
    %v82 = vunpack.c.l.b16 %v67
    %v83 = vunpack.c.l.b16 %v68
    %v84 = vpack.c.b16 %v81, %v80
    %v85 = vpack.c.b16 %v83, %v82
    %vm88 = vcmask 261120
    %v90 = vsel %vm88, %v64, 0
    %92 = vmatprep.subr.bf16.mxu0 0
    %93 = vmatpush1.bf16.msra.mxu0 0
    %94 = vmatprep.subr.bf16.mxu0 0
    %95 = vmatpush1.bf16.msra.mxu0 0
    %96 = vmatprep.subr.bf16.mxu0 0
    %97 = vmatpush1.bf16.msra.mxu0 0
    %98 = vmatprep.subr.bf16.mxu0 0
    %99 = vmatpush1.bf16.msra.mxu0 0
    %100 = vmatprep.subr.bf16.mxu0 0
    %101 = vmatpush1.bf16.msra.mxu0 0
    %102 = vmatprep.subr.bf16.mxu0 0
    %103 = vmatpush1.bf16.msra.mxu0 0
    %104 = vmatprep.subr.bf16.mxu0 0
    %105 = vmatpush1.bf16.msra.mxu0 %v85
    %106 = vmatprep.subr.bf16.mxu0 0
    %107 = vmatpush1.bf16.msra.mxu0 %v84
    %108 = vmatprep.subr.bf16.mxu0 0
    %109 = vmatpush2.bf16.msra.mxu0 0
    %110 = vmatprep.subr.bf16.mxu0 0
    %111 = vmatpush2.bf16.msra.mxu0 0
    %112 = vmatprep.subr.bf16.mxu0 0
    %113 = vmatpush2.bf16.msra.mxu0 0
    %114 = vmatprep.subr.bf16.mxu0 0
    %115 = vmatpush2.bf16.msra.mxu0 0
    %116 = vmatprep.subr.bf16.mxu0 0
    %117 = vmatpush2.bf16.msra.mxu0 0
    %118 = vmatprep.subr.bf16.mxu0 0
    %119 = vmatpush2.bf16.msra.mxu0 0
    %120 = vmatprep.subr.bf16.mxu0 0
    %121 = vmatpush2.bf16.msra.mxu0 0
    %122 = vmatprep.subr.bf16.mxu0 0
    %123 = vmatpush2.bf16.msra.mxu0 0
    %124 = vmatprep.mubr.bf16.mxu0 0
    %125 = vmatmul.mubr.bf16.gmra.mxu0 %v90
    %v126 = vpop.f32.mrf.mxu0
    %v127 = vadd.f32 %v74, %v126
    %v128 = vpop.f32.mrf.mxu0
    %v129 = vpop.f32.mrf.mxu0
    %v130 = vadd.f32 %v74, %v129
    %v131 = vpop.f32.mrf.mxu0
    %132 = vdwg.mxu0
    %v133 = vmax.f32 %v127, 0.0
    %v134 = vmax.f32 %v130, 0.0
    %v135 = vpack.c.bf16 %v134, %v133
    %v136 = vld [vmem:[#allocation6] sm:$0xf]
    %v137 = vld [vmem:[#allocation6 + $0x4] sm:$0xf]
    %v138 = vld [vmem:[#allocation6 + $0x8] sm:$0xf]
    %v139 = vld [vmem:[#allocation6 + $0xc] sm:$0xf]
    %v140 = vld [vmem:[#allocation6 + $0x10] sm:$0xf]
    %v141 = vld [vmem:[#allocation6 + $0x14] sm:$0xf]
    %v142 = vld [vmem:[#allocation6 + $0x18] sm:$0xf]
    %v143 = vld [vmem:[#allocation6 + $0x1c] sm:$0xf]
    %v144 = vld [vmem:[#allocation6 + $0x20] sm:$0xf]
    %v145 = vld [vmem:[#allocation6 + $0x24] sm:$0xf]
    %v146 = vld [vmem:[#allocation6 + $0x28] sm:$0xf]
    %v147 = vld [vmem:[#allocation6 + $0x2c] sm:$0xf]
    %v148 = vld [vmem:[#allocation6 + $0x30] sm:$0xf]
    %v149 = vld [vmem:[#allocation6 + $0x34] sm:$0xf]
    %v150 = vld [vmem:[#allocation6 + $0x38] sm:$0xf]
    %v151 = vld [vmem:[#allocation6 + $0x3c] sm:$0xf]
    %v152 = vld [vmem:[%s4] sm:$0x1]
    %v154 = vlaneseq
    %v155 = vshrl.u32 %v154, 7
    %v156 = vsub.s32 0, %v155
    %v157 = vrot.slane %v152, %v156
    %v175 = vunpack.c.l.b16 %v136
    %v176 = vunpack.c.l.b16 %v137
    %v177 = vunpack.c.l.b16 %v138
    %v178 = vunpack.c.l.b16 %v139
    %v179 = vunpack.c.l.b16 %v140
    %v180 = vunpack.c.l.b16 %v141
    %v181 = vunpack.c.l.b16 %v142
    %v182 = vunpack.c.l.b16 %v143
    %v183 = vunpack.c.l.b16 %v144
    %v184 = vunpack.c.l.b16 %v145
    %v185 = vunpack.c.l.b16 %v146
    %v186 = vunpack.c.l.b16 %v147
    %v187 = vunpack.c.l.b16 %v148
    %v188 = vunpack.c.l.b16 %v149
    %v189 = vunpack.c.l.b16 %v150
    %v190 = vunpack.c.l.b16 %v151
    %v191 = vpack.c.b16 %v176, %v175
    %v192 = vpack.c.b16 %v178, %v177
    %v193 = vpack.c.b16 %v180, %v179
    %v194 = vpack.c.b16 %v182, %v181
    %v195 = vpack.c.b16 %v184, %v183
    %v196 = vpack.c.b16 %v186, %v185
    %v197 = vpack.c.b16 %v188, %v187
    %v198 = vpack.c.b16 %v190, %v189
    %207 = vmatprep.subr.bf16.mxu0 0
    %208 = vmatpush1.bf16.msra.mxu0 %v198
    %209 = vmatprep.subr.bf16.mxu0 0
    %210 = vmatpush1.bf16.msra.mxu0 %v197
    %211 = vmatprep.subr.bf16.mxu0 0
    %212 = vmatpush1.bf16.msra.mxu0 %v196
    %213 = vmatprep.subr.bf16.mxu0 0
    %214 = vmatpush1.bf16.msra.mxu0 %v195
    %215 = vmatprep.subr.bf16.mxu0 0
    %216 = vmatpush1.bf16.msra.mxu0 %v194
    %217 = vmatprep.subr.bf16.mxu0 0
    %218 = vmatpush1.bf16.msra.mxu0 %v193
    %219 = vmatprep.subr.bf16.mxu0 0
    %220 = vmatpush1.bf16.msra.mxu0 %v192
    %221 = vmatprep.subr.bf16.mxu0 0
    %222 = vmatpush1.bf16.msra.mxu0 %v191
    %223 = vmatprep.subr.bf16.mxu0 0
    %224 = vmatpush2.bf16.msra.mxu0 0
    %225 = vmatprep.subr.bf16.mxu0 0
    %226 = vmatpush2.bf16.msra.mxu0 0
    %227 = vmatprep.subr.bf16.mxu0 0
    %228 = vmatpush2.bf16.msra.mxu0 0
    %229 = vmatprep.subr.bf16.mxu0 0
    %230 = vmatpush2.bf16.msra.mxu0 0
    %231 = vmatprep.subr.bf16.mxu0 0
    %232 = vmatpush2.bf16.msra.mxu0 0
    %233 = vmatprep.subr.bf16.mxu0 0
    %234 = vmatpush2.bf16.msra.mxu0 0
    %235 = vmatprep.subr.bf16.mxu0 0
    %236 = vmatpush2.bf16.msra.mxu0 0
    %237 = vmatprep.subr.bf16.mxu0 0
    %238 = vmatpush2.bf16.msra.mxu0 0
    %239 = vmatprep.mubr.bf16.mxu0 0
    %240 = vmatmul.mubr.bf16.gmra.mxu0 %v135
    %v241 = vpop.f32.mrf.mxu0
    %v242 = vadd.f32 %v157, %v241
    %v243 = vpop.f32.mrf.mxu0
    %v244 = vpop.f32.mrf.mxu0
    %v245 = vadd.f32 %v157, %v244
    %v246 = vpop.f32.mrf.mxu0
    %247 = vdwg.mxu0
    %v248 = vsub.f32 0.0, %v242
    %v249 = vsub.f32 0.0, %v245
    %v250 = vmul.f32 %v248, 1.442695
    %v251 = vpow.pop %v250
    %v252 = vmul.f32 %v249, 1.442695
    %v253 = vpow.pop %v252
    %v254 = vadd.f32 %v251, 1.0
    %v255 = vadd.f32 %v253, 1.0
    %v256 = vrcp.pop %v254
    %v257 = vrcp.pop %v255
    %vm258 = vcmask 31744
    %259 = vst.msk [vmem:[#allocation7] sm:$0xff] %vm258, %v256
    %260 = vst.msk [vmem:[#allocation7 + $0x8] sm:$0xff] %vm258, %v257
    // Predicated region
    $region34: #{neural_net_forward.1} parent=1 // pred_check
      _
    $region35: #{neural_net_forward.1} parent=1 // pred_check_branch
      %262 = sbr.rel (0) target = $region37
    $region36: #{neural_net_forward.1} parent=1 // pred_region
      // Predicated region
      $region38: #{neural_net_forward.1} parent=36 // pred_check
        _
      $region39: #{neural_net_forward.1} parent=36 // pred_check_branch
        %264 = sbr.rel (0) target = $region41
      $region40: #{neural_net_forward.1} parent=36 // pred_region
        // Predicated region
        $region42: #{neural_net_forward.1} parent=40 // pred_check
          _
        $region43: #{neural_net_forward.1} parent=40 // pred_check_branch
          %266 = sbr.rel (0) target = $region45
        $region44: #{neural_net_forward.1} parent=40 // pred_region
          // Predicated region
          $region57: #{neural_net_forward.1} parent=44 // pred_check
            _
          $region58: #{neural_net_forward.1} parent=44 // pred_check_branch
            %282 = sbr.rel (0) target = $region60
          $region59: #{neural_net_forward.1} parent=44 // pred_region
            loop: start=0, step=1, limit=1
            $region61: #{neural_net_forward.1} parent=59 // loop_pre_header
              _
            $region62: #{neural_net_forward.1} parent=59 // loop_header
              %s284 = sphi 0, %s288
              %p285 = scmp.ge.s32.totalorder %s284, 1
              %s289 = sphi [#allocation7], [#allocation7]
              %s290 = sphi %s5, %s5
            $region63: #{neural_net_forward.1} parent=59 // loop_header_branch
              %287 = sbr.rel (%p285) target = $region67
            $region64: #{neural_net_forward.1} parent=59 // loop_body
              %v291 = vld [vmem:[%s289] sm:$0xff]
              %292 = vst [vmem:[%s290] sm:$0xff] %v291
            $region65: #{neural_net_forward.1} parent=59 // loop_footer
              %s288 = sadd.s32 1, %s284
            $region66: #{neural_net_forward.1} parent=59 // loop_footer_branch
              %283 = sbr.rel target = $region62
            $region67: #{neural_net_forward.1} parent=59 // loop_exit
              _
          $region60: #{neural_net_forward.1} parent=44 // pred_fallthru
            _
          // Predicated region
          $region68: #{neural_net_forward.1} parent=44 // pred_check
            _
          $region69: #{neural_net_forward.1} parent=44 // pred_check_branch
            %294 = sbr.rel target = $region71
          $region70: #{neural_net_forward.1} parent=44 // pred_region
            _
          $region71: #{neural_net_forward.1} parent=44 // pred_fallthru
            _
        $region45: #{neural_net_forward.1} parent=40 // pred_fallthru
          _
        // Predicated region
        $region46: #{neural_net_forward.1} parent=40 // pred_check
          _
        $region47: #{neural_net_forward.1} parent=40 // pred_check_branch
          %268 = sbr.rel target = $region49
        $region48: #{neural_net_forward.1} parent=40 // pred_region
          %s270 = ssub.s32 256, 1
          loop: start=0, step=1, limit=1
          $region50: #{neural_net_forward.1} parent=48 // loop_pre_header
            _
          $region51: #{neural_net_forward.1} parent=48 // loop_header
            %s272 = sphi 0, %s276
            %p273 = scmp.ge.s32.totalorder %s272, 1
            %s277 = sphi [#allocation7], [#allocation7]
            %s278 = sphi %s5, %s5
          $region52: #{neural_net_forward.1} parent=48 // loop_header_branch
            %275 = sbr.rel (%p273) target = $region56
          $region53: #{neural_net_forward.1} parent=48 // loop_body
            %v279 = vld [vmem:[%s277] sm:%s270]
            %280 = vst [vmem:[%s278] sm:%s270] %v279
          $region54: #{neural_net_forward.1} parent=48 // loop_footer
            %s276 = sadd.s32 1, %s272
          $region55: #{neural_net_forward.1} parent=48 // loop_footer_branch
            %271 = sbr.rel target = $region51
          $region56: #{neural_net_forward.1} parent=48 // loop_exit
            _
        $region49: #{neural_net_forward.1} parent=40 // pred_fallthru
          _
      $region41: #{neural_net_forward.1} parent=36 // pred_fallthru
        _
      %295 = vnop
    $region37: #{neural_net_forward.1} parent=1 // pred_fallthru
      _
    // Predicated region
    $region72: #{neural_net_forward.1} parent=1 // pred_check
      _
    $region73: #{neural_net_forward.1} parent=1 // pred_check_branch
      %297 = sbr.rel (0) target = $region75
    $region74: #{neural_net_forward.1} parent=1 // pred_region
      _
    $region75: #{neural_net_forward.1} parent=1 // pred_fallthru
      _
    %298 = vsyncpa [#allocation3], 1
    %299 = vsyncpa [#allocation5], 1

</llo_original>
